<compile_context>
chip_gen: v7x
topology: tpu7x:2x2x1
jax: 0.10.0
libtpu: 0.0.40
codegen_flags: <defaults>
</compile_context>

<pallas_src>
import jax
import jax.numpy as jnp
from jax.experimental import pallas as pl
from jax.experimental.pallas import tpu as pltpu

BN_EPS = 1e-5  # PyTorch BatchNorm1d default eps


def _round_up(x, m):
    return ((x + m - 1) // m) * m


# ---------------------------------------------------------------------------
# Stage 1: folded-BN -> ELU -> per-bond-type Linear, producing the "stacked"
# tensor already in bond-major layout:
#   out[b, n, f] == Linear(ELU(BN(x)))[n, b*Fout + f]
# ---------------------------------------------------------------------------
def _bn_elu_linear_kernel(x_ref, scale_ref, shift_ref, w_ref, b_ref, out_ref):
    # Folded BatchNorm1d (eval, running stats): one FMA per element.
    h = x_ref[...] * scale_ref[...] + shift_ref[...]
    # ELU (alpha=1).  exp argument clamped at 0 so the unselected branch of the
    # where never overflows.
    h = jnp.where(h > 0, h, jnp.exp(jnp.minimum(h, 0.0)) - 1.0)
    # Per-bond-type Linear: [tn, Fin] @ [Fin, Fout_pad] + bias  (MXU, f32 acc).
    y = jnp.dot(h, w_ref[0], preferred_element_type=jnp.float32) + b_ref[0]
    out_ref[0] = y.astype(out_ref.dtype)


# ---------------------------------------------------------------------------
# Stage 2: tiled spmm   out[Mt, Fp] += adj[Mt, Kt] @ stacked[Kt, Fp]
# The adjacency tile is cast to the stacked dtype inside the kernel, so the
# wrapper never makes an extra HBM pass over bond_info.
# ---------------------------------------------------------------------------
def _spmm_kernel(adj_ref, y_ref, out_ref, acc_ref):
    @pl.when(pl.program_id(1) == 0)
    def _():
        acc_ref[...] = jnp.zeros_like(acc_ref)

    a = adj_ref[...].astype(y_ref.dtype)
    acc_ref[...] += jnp.dot(a, y_ref[...], preferred_element_type=jnp.float32)

    @pl.when(pl.program_id(1) == pl.num_programs(1) - 1)
    def _():
        out_ref[...] = acc_ref[...].astype(out_ref.dtype)


def _choose_k_tile(k_dim, f_out_pad, tm, y_itemsize,
                   vmem_budget=22 * 1024 * 1024):
    """Pick the contraction tile tk and the (possibly padded) K length."""
    # Prefer one full-K block: the stacked operand then has a constant block
    # index, stays resident in VMEM across all M tiles and is read from HBM
    # exactly once; the K grid axis disappears.
    full_bytes = (2 * k_dim * f_out_pad * y_itemsize   # stacked (double buf)
                  + 2 * tm * k_dim * 4                 # adj tile (double buf)
                  + 3 * tm * f_out_pad * 4)            # out (double buf) + acc
    if full_bytes <= vmem_budget:
        return k_dim, k_dim
    for cand in (2048, 1024, 512, 256, 128):
        if k_dim % cand == 0:
            return cand, k_dim
    # Rare fallback: huge K not a multiple of 128 -> zero-pad so the adjacency
    # tile stays lane-aligned (never hit by the demo shapes).
    return 512, _round_up(k_dim, 512)


def mol_conv(atom_features, bond_info, params, *, num_bond_types,
             num_out_features, compute_dtype=jnp.float32):
    """MolConv forward (conditional=False, activation='elu').

    atom_features: [N, Fin] float32
    bond_info:     [M, B*N] float32 dense adjacency (the torch.spmm operand)
    params: (gamma, beta, running_mean, running_var,
             weight [B*Fout, Fin], bias [B*Fout])
    compute_dtype: dtype of the spmm operands (float32 or bfloat16);
                   accumulation is always float32.
    """
    gamma, beta, run_mean, run_var, weight, bias = params
    n_atoms, n_in = atom_features.shape
    m_rows, k_dim = bond_info.shape
    b = num_bond_types
    f_out = num_out_features
    assert k_dim == b * n_atoms
    f_out_pad = _round_up(f_out, 128)          # lane-dense stacked / output
    y_itemsize = jnp.dtype(compute_dtype).itemsize

    # ---- wrapper-side one-time prep (plain XLA, all tiny) ------------------
    # Fold BN into scale/shift so the kernel does one FMA per element.
    scale = (gamma.astype(jnp.float32)
             * jax.lax.rsqrt(run_var.astype(jnp.float32) + BN_EPS))
    shift = beta.astype(jnp.float32) - run_mean.astype(jnp.float32) * scale
    scale = scale.reshape(1, n_in)
    shift = shift.reshape(1, n_in)
    # Per-bond-type weights, leading-axis indexed: [B, Fin, Fout_pad].
    w = weight.reshape(b, f_out, n_in).transpose(0, 2, 1).astype(jnp.float32)
    w = jnp.pad(w, ((0, 0), (0, 0), (0, f_out_pad - f_out)))
    bb = jnp.pad(bias.reshape(b, 1, f_out).astype(jnp.float32),
                 ((0, 0), (0, 0), (0, f_out_pad - f_out)))

    # ---- Stage 1: BN -> ELU -> per-bond Linear -----------------------------
    tn = n_atoms if n_atoms <= 1024 else 512     # ragged tail only if N > 1024
    grid_n = pl.cdiv(n_atoms, tn)
    stacked3 = pl.pallas_call(
        _bn_elu_linear_kernel,
        out_shape=jax.ShapeDtypeStruct((b, n_atoms, f_out_pad), compute_dtype),
        grid_spec=pltpu.PrefetchScalarGridSpec(
            num_scalar_prefetch=0,
            grid=(b, grid_n),
            in_specs=[
                pl.BlockSpec((tn, n_in), lambda i, j: (j, 0)),
                pl.BlockSpec((1, n_in), lambda i, j: (0, 0)),
                pl.BlockSpec((1, n_in), lambda i, j: (0, 0)),
                pl.BlockSpec((1, n_in, f_out_pad), lambda i, j: (i, 0, 0)),
                pl.BlockSpec((1, 1, f_out_pad), lambda i, j: (i, 0, 0)),
            ],
            out_specs=pl.BlockSpec((1, tn, f_out_pad), lambda i, j: (i, j, 0)),
        ),
        compiler_params=pltpu.CompilerParams(
            dimension_semantics=("parallel", "parallel"),
            vmem_limit_bytes=32 * 1024 * 1024,
        ),
        cost_estimate=pl.CostEstimate(
            flops=2 * b * n_atoms * n_in * f_out_pad + 4 * b * n_atoms * n_in,
            transcendentals=b * n_atoms * n_in,
            bytes_accessed=(4 * (atom_features.size + w.size + bb.size)
                            + b * n_atoms * f_out_pad * y_itemsize),
        ),
    )(atom_features.astype(jnp.float32), scale, shift, w, bb)

    # [B, N, Fp] -> [B*N, Fp]: contiguous reshape == the module's
    # view/transpose/view, no data movement.
    stacked = stacked3.reshape(k_dim, f_out_pad)

    # ---- Stage 2: tiled spmm ------------------------------------------------
    tm = m_rows if m_rows <= 512 else 512        # ragged tail only if M > 512
    grid_m = pl.cdiv(m_rows, tm)
    tk, k_pad = _choose_k_tile(k_dim, f_out_pad, tm, y_itemsize)
    adj = bond_info
    if k_pad != k_dim:   # rare fallback: lane-align a huge, ragged K axis
        adj = jnp.pad(adj, ((0, 0), (0, k_pad - k_dim)))
        stacked = jnp.pad(stacked, ((0, k_pad - k_dim), (0, 0)))
    grid_k = k_pad // tk

    adj_itemsize = adj.dtype.itemsize
    out_pad = pl.pallas_call(
        _spmm_kernel,
        out_shape=jax.ShapeDtypeStruct((m_rows, f_out_pad), jnp.float32),
        grid_spec=pltpu.PrefetchScalarGridSpec(
            num_scalar_prefetch=0,
            grid=(grid_m, grid_k),
            in_specs=[
                pl.BlockSpec((tm, tk), lambda i, k: (i, k)),
                pl.BlockSpec((tk, f_out_pad), lambda i, k: (k, 0)),
            ],
            out_specs=pl.BlockSpec((tm, f_out_pad), lambda i, k: (i, 0)),
            scratch_shapes=[pltpu.VMEM((tm, f_out_pad), jnp.float32)],
        ),
        compiler_params=pltpu.CompilerParams(
            dimension_semantics=("parallel", "arbitrary"),
            vmem_limit_bytes=32 * 1024 * 1024,
        ),
        cost_estimate=pl.CostEstimate(
            flops=2 * m_rows * k_pad * f_out_pad,
            transcendentals=0,
            bytes_accessed=(m_rows * k_pad * adj_itemsize
                            + grid_m * k_pad * f_out_pad * y_itemsize
                            + m_rows * f_out_pad * 4),
        ),
    )(adj, stacked)

    # TODO(synk): conditional=True branch (linear_cond on cond_features + row
    # concat before the spmm) not implemented; module default conditional=False
    # is covered exactly.
    return out_pad[:, :f_out]          # slice off the lane padding


def mol_conv_reference(atom_features, bond_info, params, *, num_bond_types,
                       num_out_features):
    """Pure-JAX reference mirroring the PyTorch forward."""
    gamma, beta, run_mean, run_var, weight, bias = params
    h = (atom_features - run_mean) / jnp.sqrt(run_var + BN_EPS) * gamma + beta
    h = jnp.where(h > 0, h, jnp.exp(jnp.minimum(h, 0.0)) - 1.0)   # ELU
    y = h @ weight.T + bias                                       # [N, B*Fout]
    n = atom_features.shape[0]
    stacked = (y.reshape(n, num_bond_types, num_out_features)
                .transpose(1, 0, 2)
                .reshape(num_bond_types * n, num_out_features))
    return bond_info @ stacked


if __name__ == "__main__":
    def make_inputs(key, n_atoms, n_in, b, f_out, m_rows):
        ks = jax.random.split(key, 8)
        x = jax.random.normal(ks[0], (n_atoms, n_in), jnp.float32)
        dense = jax.random.normal(ks[1], (m_rows, b * n_atoms), jnp.float32)
        mask = jax.random.uniform(ks[2], (m_rows, b * n_atoms)) < 0.25
        adj = jnp.where(mask, dense, 0.0).astype(jnp.float32)   # ~75% zeros
        out_total = b * f_out
        gamma = 1.0 + 0.1 * jax.random.normal(ks[3], (n_in,), jnp.float32)
        beta = 0.1 * jax.random.normal(ks[4], (n_in,), jnp.float32)
        run_mean = 0.1 * jax.random.normal(ks[5], (n_in,), jnp.float32)
        run_var = 1.0 + 0.1 * jax.random.uniform(ks[6], (n_in,), jnp.float32)
        wk, bk = jax.random.split(ks[7])
        weight = 0.1 * jax.random.normal(wk, (out_total, n_in), jnp.float32)
        bias = 0.1 * jax.random.normal(bk, (out_total,), jnp.float32)
        return x, adj, (gamma, beta, run_mean, run_var, weight, bias)

    key = jax.random.PRNGKey(0)
    k1, k2 = jax.random.split(key)

    # ---- Test 1: aligned shapes, f32 and bf16 spmm-operand paths -----------
    N, FIN, B, FOUT, M = 16, 8, 4, 32, 16
    x, adj, params = make_inputs(k1, N, FIN, B, FOUT, M)
    ref = mol_conv_reference(x, adj, params, num_bond_types=B,
                             num_out_features=FOUT)

    out_f32 = jax.block_until_ready(
        mol_conv(x, adj, params, num_bond_types=B, num_out_features=FOUT,
                 compute_dtype=jnp.float32))
    assert out_f32.shape == (M, FOUT)
    assert jnp.allclose(out_f32, ref, atol=1e-3, rtol=1e-3), \
        "Pallas f32 output mismatch vs reference"

    out_bf16 = jax.block_until_ready(
        mol_conv(x, adj, params, num_bond_types=B, num_out_features=FOUT,
                 compute_dtype=jnp.bfloat16))
    assert jnp.allclose(out_bf16, ref, atol=5e-2, rtol=5e-2), \
        "Pallas bf16 output mismatch vs reference"

    # ---- Test 2: deliberately unaligned small shapes ------------------------
    N2, FIN2, B2, FOUT2, M2 = 19, 11, 3, 40, 21
    x2, adj2, params2 = make_inputs(k2, N2, FIN2, B2, FOUT2, M2)
    ref2 = mol_conv_reference(x2, adj2, params2, num_bond_types=B2,
                              num_out_features=FOUT2)
    out2 = jax.block_until_ready(
        mol_conv(x2, adj2, params2, num_bond_types=B2, num_out_features=FOUT2,
                 compute_dtype=jnp.float32))
    assert out2.shape == (M2, FOUT2)
    assert jnp.allclose(out2, ref2, atol=1e-3, rtol=1e-3), \
        "Pallas unaligned-shape output mismatch vs reference"

    print("KERNEL_OK")
</pallas_src>

<mosaic_0001>
module attributes {stable_mosaic.version = 11 : i64} {
  func.func @_bn_elu_linear_kernel(%arg0: i32, %arg1: i32, %arg2: memref<16x8xf32, #tpu.memory_space<vmem>>, %arg3: memref<1x8xf32, #tpu.memory_space<vmem>>, %arg4: memref<1x8xf32, #tpu.memory_space<vmem>>, %arg5: memref<1x8x128xf32, #tpu.memory_space<vmem>>, %arg6: memref<1x1x128xf32, #tpu.memory_space<vmem>>, %arg7: memref<1x16x128xf32, #tpu.memory_space<vmem>>) attributes {dimension_semantics = [#tpu.dimension_semantics<parallel>, #tpu.dimension_semantics<parallel>], iteration_bounds = array<i64: 4, 1>, scalar_prefetch = 0 : i64, scratch_operands = 0 : i64, tpu.core_type = #tpu.core_type<tc>, window_params = [{transform_indices = @transform_0, window_bounds = array<i64: 16, 8>}, {pipeline_mode = #tpu.pipeline_mode<synchronous>, transform_indices = @transform_1, window_bounds = array<i64: 1, 8>}, {pipeline_mode = #tpu.pipeline_mode<synchronous>, transform_indices = @transform_2, window_bounds = array<i64: 1, 8>}, {transform_indices = @transform_3, window_bounds = array<i64: 1, 8, 128>}, {transform_indices = @transform_4, window_bounds = array<i64: 1, 1, 128>}, {transform_indices = @transform_5, window_bounds = array<i64: 1, 16, 128>}]} {
    %c0 = arith.constant 0 : index
    %c0_0 = arith.constant 0 : index
    %0 = vector.load %arg2[%c0, %c0_0] : memref<16x8xf32, #tpu.memory_space<vmem>>, vector<16x8xf32>
    %c0_1 = arith.constant 0 : index
    %c0_2 = arith.constant 0 : index
    %1 = vector.load %arg3[%c0_1, %c0_2] : memref<1x8xf32, #tpu.memory_space<vmem>>, vector<1x8xf32>
    %2 = vector.broadcast %1 : vector<1x8xf32> to vector<16x8xf32>
    %3 = arith.mulf %0, %2 : vector<16x8xf32>
    %c0_3 = arith.constant 0 : index
    %c0_4 = arith.constant 0 : index
    %4 = vector.load %arg4[%c0_3, %c0_4] : memref<1x8xf32, #tpu.memory_space<vmem>>, vector<1x8xf32>
    %5 = vector.broadcast %4 : vector<1x8xf32> to vector<16x8xf32>
    %6 = arith.addf %3, %5 : vector<16x8xf32>
    %cst = arith.constant 0.000000e+00 : f32
    %7 = vector.broadcast %cst : f32 to vector<16x8xf32>
    %8 = arith.cmpf ogt, %6, %7 : vector<16x8xf32>
    %cst_5 = arith.constant 0.000000e+00 : f32
    %9 = vector.broadcast %cst_5 : f32 to vector<16x8xf32>
    %10 = arith.minimumf %6, %9 : vector<16x8xf32>
    %11 = math.exp %10 : vector<16x8xf32>
    %cst_6 = arith.constant 1.000000e+00 : f32
    %12 = vector.broadcast %cst_6 : f32 to vector<16x8xf32>
    %13 = arith.subf %11, %12 : vector<16x8xf32>
    %14 = arith.select %8, %6, %13 : vector<16x8xi1>, vector<16x8xf32>
    %c0_7 = arith.constant 0 : index
    %c0_8 = arith.constant 0 : index
    %c0_9 = arith.constant 0 : index
    %15 = vector.load %arg5[%c0_7, %c0_8, %c0_9] : memref<1x8x128xf32, #tpu.memory_space<vmem>>, vector<1x8x128xf32>
    %16 = vector.shape_cast %15 : vector<1x8x128xf32> to vector<8x128xf32>
    %cst_10 = arith.constant dense<0.000000e+00> : vector<16x128xf32>
    %17 = tpu.matmul %14, %16, %cst_10 {dimension_numbers = #tpu.dot_dimension_numbers<[1], [0], [0], [1], [0, 0, 1, 1], [], []>} : vector<16x8xf32>, vector<8x128xf32>, vector<16x128xf32> -> vector<16x128xf32>
    %c0_11 = arith.constant 0 : index
    %c0_12 = arith.constant 0 : index
    %c0_13 = arith.constant 0 : index
    %18 = vector.load %arg6[%c0_11, %c0_12, %c0_13] : memref<1x1x128xf32, #tpu.memory_space<vmem>>, vector<1x1x128xf32>
    %19 = vector.shape_cast %18 : vector<1x1x128xf32> to vector<1x128xf32>
    %20 = vector.broadcast %19 : vector<1x128xf32> to vector<16x128xf32>
    %21 = arith.addf %17, %20 : vector<16x128xf32>
    %c0_14 = arith.constant 0 : index
    %c0_15 = arith.constant 0 : index
    %c0_16 = arith.constant 0 : index
    %22 = vector.load %arg7[%c0_14, %c0_15, %c0_16] : memref<1x16x128xf32, #tpu.memory_space<vmem>>, vector<1x16x128xf32>
    %23 = vector.shape_cast %22 : vector<1x16x128xf32> to vector<16x128xf32>
    %24 = vector.shape_cast %21 : vector<16x128xf32> to vector<1x16x128xf32>
    tpu.vector_store %arg7[%c0_14, %c0_15, %c0_16], %24 {strides = array<i32>} : memref<1x16x128xf32, #tpu.memory_space<vmem>>, vector<1x16x128xf32>,
    return
  }
  func.func @transform_0(%arg0: i32, %arg1: i32) -> (i32, i32) {
    %c0_i32 = arith.constant 0 : i32
    %c0_i32_0 = arith.constant 0 : i32
    return %arg1, %c0_i32 : i32, i32
  }
  func.func @transform_1(%arg0: i32, %arg1: i32) -> (i32, i32) {
    %c0_i32 = arith.constant 0 : i32
    %c0_i32_0 = arith.constant 0 : i32
    %c0_i32_1 = arith.constant 0 : i32
    return %c0_i32, %c0_i32_0 : i32, i32
  }
  func.func @transform_2(%arg0: i32, %arg1: i32) -> (i32, i32) {
    %c0_i32 = arith.constant 0 : i32
    %c0_i32_0 = arith.constant 0 : i32
    %c0_i32_1 = arith.constant 0 : i32
    return %c0_i32, %c0_i32_0 : i32, i32
  }
  func.func @transform_3(%arg0: i32, %arg1: i32) -> (i32, i32, i32) {
    %c0_i32 = arith.constant 0 : i32
    %c0_i32_0 = arith.constant 0 : i32
    %c0_i32_1 = arith.constant 0 : i32
    return %arg0, %c0_i32, %c0_i32_0 : i32, i32, i32
  }
  func.func @transform_4(%arg0: i32, %arg1: i32) -> (i32, i32, i32) {
    %c0_i32 = arith.constant 0 : i32
    %c0_i32_0 = arith.constant 0 : i32
    %c0_i32_1 = arith.constant 0 : i32
    return %arg0, %c0_i32, %c0_i32_0 : i32, i32, i32
  }
  func.func @transform_5(%arg0: i32, %arg1: i32) -> (i32, i32, i32) {
    %c0_i32 = arith.constant 0 : i32
    %c0_i32_0 = arith.constant 0 : i32
    return %arg0, %arg1, %c0_i32 : i32, i32, i32
  }
}

</mosaic_0001>

<llo_original>
// kernel: tpu_custom_call.1
$region0: #{tpu_custom_call.1}
  #allocation0 [shape = 'u32[]', space=smem, size = 0x4, offset = 0x4, fixed_abs, tag = 'smem constant byte address 0x4 - core index']
  #allocation1 [shape = 'u32[144,128]{1,0:T(1,128)}', space=vmem, size = 0x12000, scoped, tag = 'internal scratch']
  %s0 = inlined_call_operand.vmem [shape: f32[16,8], index: 0, kind: input, shape index: {}]
  %s1 = inlined_call_operand.vmem [shape: f32[1,8], index: 1, kind: input, shape index: {}]
  %s2 = inlined_call_operand.vmem [shape: f32[1,8], index: 2, kind: input, shape index: {}]
  %s3 = inlined_call_operand.vmem [shape: f32[4,8,128], index: 3, kind: input, shape index: {}]
  %s4 = inlined_call_operand.vmem [shape: f32[4,1,128], index: 4, kind: input, shape index: {}]
  %s5 = inlined_call_operand.hbm [shape: f32[4,16,128], index: 5, kind: output, shape index: {}]
  %s6 = sld [smem:[#allocation0]]
  $region53: #{tpu_custom_call.1} parent=0
    _
  %s8 = ssub.s32 1, %s6
  %s9 = scalar_select 0, %s8, %s6
  $region1: #{tpu_custom_call.1} parent=0
    #allocation2 [shape = 'u8[16384]{0}', space=vmem, size = 0x4000, scoped, tag = 'output window, operand 0']
    #allocation3 [shape = 's32[2]{0}', space=sflag, size = 0x8, scoped, tag = 'scoped memory for tpu_custom_call.1']
    %10 = vsyncpa [#allocation3], 0
    %s11 = scalar_lea.sflag [#allocation3], 1
    %12 = vsyncpa %s11, 0
    loop: start=0, step=1, limit=6
    $region2: #{tpu_custom_call.1} parent=1 // loop_pre_header
      _
    $region3: #{tpu_custom_call.1} parent=1 // loop_header
      %s14 = sphi 0, %s18
      %p15 = scmp.ge.s32.totalorder %s14, 6
      %s21 = sphi 0, %s33
      %s22 = sphi 0, %s29
      %s23 = sphi 0, %s21
      %s24 = sphi 0, %s22
      %s25 = sphi 0, %s23
      %s26 = sphi 0, %s24
      %s36 = sphi 0, %s38
      %s39 = sphi 0, %s36
      %s40 = sphi 0, %s39
      %s56 = sphi 0, %s40
      %s60 = sphi 0, %s60
      %s62 = sphi 0, %s60
      %s63 = sphi 0, %s62
      %s77 = sphi 0, %s63
      %s81 = sphi 0, %s81
      %s83 = sphi 0, %s81
      %s84 = sphi 0, %s83
      %s98 = sphi 0, %s84
      %s104 = sphi 0, %s106
      %s107 = sphi 0, %s104
      %s108 = sphi 0, %s107
      %s124 = sphi 0, %s108
      %s130 = sphi 0, %s132
      %s133 = sphi 0, %s130
      %s134 = sphi 0, %s133
      %s150 = sphi 0, %s134
      %s158 = sphi 0, %s160
      %s161 = sphi 0, %s158
      %s162 = sphi 0, %s161
      %s178 = sphi 0, %s162
    $region4: #{tpu_custom_call.1} parent=1 // loop_header_branch
      %17 = sbr.rel (%p15) target = $region8
    $region5: #{tpu_custom_call.1} parent=1 // loop_body
      %s19 = ssub.s32 %s14, 1
      %s20 = ssub.s32 %s14, 2
      %s27 = sadd.s32 1, %s22
      %p28 = scmp.ge.s32.totalorder %s27, 1
      %s29 = scalar_select %p28, 0, %s27
      %s30 = sadd.s32 1, %s21
      %s31 = scalar_select %p28, %s30, %s21
      %p32 = scmp.ge.s32.totalorder %s31, 4
      %s33 = scalar_select %p32, 0, %s31
      %s34 = ssub.s32 %s22, %s29
      %p35 = scmp.eq.s32.totalorder %s34, 0
      %s37 = sadd.s32 %s36, 1
      %s38 = scalar_select %p35, %s36, %s37
      %p41 = pneg %p35
      %p42 = scmp.eq.s32.totalorder %s14, 3
      %p43 = por %p41, %p42
      %p44 = scmp.ne.s32.totalorder %s36, %s39
      %p45 = scmp.eq.s32.totalorder %s14, 0
      %p46 = por %p44, %p45
      %p47 = scmp.ne.s32.totalorder %s36, %s39
      %p48 = scmp.eq.s32.totalorder %s19, 3
      %p49 = por %p47, %p48
      %p50 = scmp.ne.s32.totalorder %s39, %s40
      %p51 = scmp.eq.s32.totalorder %s19, 0
      %p52 = por %p50, %p51
      %p53 = scmp.ne.s32.totalorder %s39, %s40
      %p54 = scmp.eq.s32.totalorder %s20, 3
      %p55 = por %p53, %p54
      %p57 = scmp.ne.s32.totalorder %s40, %s56
      %p58 = scmp.eq.s32.totalorder %s20, 0
      %p59 = por %p57, %p58
      %s61 = sadd.s32 %s60, 1
      %p64 = scmp.eq.s32.totalorder %s14, 3
      %p65 = scmp.ne.s32.totalorder %s60, %s62
      %p66 = scmp.eq.s32.totalorder %s14, 0
      %p67 = por %p65, %p66
      %p68 = scmp.ne.s32.totalorder %s60, %s62
      %p69 = scmp.eq.s32.totalorder %s19, 3
      %p70 = por %p68, %p69
      %p71 = scmp.ne.s32.totalorder %s62, %s63
      %p72 = scmp.eq.s32.totalorder %s19, 0
      %p73 = por %p71, %p72
      %p74 = scmp.ne.s32.totalorder %s62, %s63
      %p75 = scmp.eq.s32.totalorder %s20, 3
      %p76 = por %p74, %p75
      %p78 = scmp.ne.s32.totalorder %s63, %s77
      %p79 = scmp.eq.s32.totalorder %s20, 0
      %p80 = por %p78, %p79
      %s82 = sadd.s32 %s81, 1
      %p85 = scmp.eq.s32.totalorder %s14, 3
      %p86 = scmp.ne.s32.totalorder %s81, %s83
      %p87 = scmp.eq.s32.totalorder %s14, 0
      %p88 = por %p86, %p87
      %p89 = scmp.ne.s32.totalorder %s81, %s83
      %p90 = scmp.eq.s32.totalorder %s19, 3
      %p91 = por %p89, %p90
      %p92 = scmp.ne.s32.totalorder %s83, %s84
      %p93 = scmp.eq.s32.totalorder %s19, 0
      %p94 = por %p92, %p93
      %p95 = scmp.ne.s32.totalorder %s83, %s84
      %p96 = scmp.eq.s32.totalorder %s20, 3
      %p97 = por %p95, %p96
      %p99 = scmp.ne.s32.totalorder %s84, %s98
      %p100 = scmp.eq.s32.totalorder %s20, 0
      %p101 = por %p99, %p100
      %s102 = ssub.s32 %s21, %s33
      %p103 = scmp.eq.s32.totalorder %s102, 0
      %s105 = sadd.s32 %s104, 1
      %s106 = scalar_select %p103, %s104, %s105
      %p109 = pneg %p103
      %p110 = scmp.eq.s32.totalorder %s14, 3
      %p111 = por %p109, %p110
      %p112 = scmp.ne.s32.totalorder %s104, %s107
      %p113 = scmp.eq.s32.totalorder %s14, 0
      %p114 = por %p112, %p113
      %p115 = scmp.ne.s32.totalorder %s104, %s107
      %p116 = scmp.eq.s32.totalorder %s19, 3
      %p117 = por %p115, %p116
      %p118 = scmp.ne.s32.totalorder %s107, %s108
      %p119 = scmp.eq.s32.totalorder %s19, 0
      %p120 = por %p118, %p119
      %p121 = scmp.ne.s32.totalorder %s107, %s108
      %p122 = scmp.eq.s32.totalorder %s20, 3
      %p123 = por %p121, %p122
      %p125 = scmp.ne.s32.totalorder %s108, %s124
      %p126 = scmp.eq.s32.totalorder %s20, 0
      %p127 = por %p125, %p126
      %s128 = ssub.s32 %s21, %s33
      %p129 = scmp.eq.s32.totalorder %s128, 0
      %s131 = sadd.s32 %s130, 1
      %s132 = scalar_select %p129, %s130, %s131
      %p135 = pneg %p129
      %p136 = scmp.eq.s32.totalorder %s14, 3
      %p137 = por %p135, %p136
      %p138 = scmp.ne.s32.totalorder %s130, %s133
      %p139 = scmp.eq.s32.totalorder %s14, 0
      %p140 = por %p138, %p139
      %p141 = scmp.ne.s32.totalorder %s130, %s133
      %p142 = scmp.eq.s32.totalorder %s19, 3
      %p143 = por %p141, %p142
      %p144 = scmp.ne.s32.totalorder %s133, %s134
      %p145 = scmp.eq.s32.totalorder %s19, 0
      %p146 = por %p144, %p145
      %p147 = scmp.ne.s32.totalorder %s133, %s134
      %p148 = scmp.eq.s32.totalorder %s20, 3
      %p149 = por %p147, %p148
      %p151 = scmp.ne.s32.totalorder %s134, %s150
      %p152 = scmp.eq.s32.totalorder %s20, 0
      %p153 = por %p151, %p152
      %s154 = ssub.s32 %s21, %s33
      %s155 = ssub.s32 %s22, %s29
      %s156 = sor.u32 %s154, %s155
      %p157 = scmp.eq.s32.totalorder %s156, 0
      %s159 = sadd.s32 %s158, 1
      %s160 = scalar_select %p157, %s158, %s159
      %p163 = pneg %p157
      %p164 = scmp.eq.s32.totalorder %s14, 3
      %p165 = por %p163, %p164
      %p166 = scmp.ne.s32.totalorder %s158, %s161
      %p167 = scmp.eq.s32.totalorder %s14, 0
      %p168 = por %p166, %p167
      %p169 = scmp.ne.s32.totalorder %s158, %s161
      %p170 = scmp.eq.s32.totalorder %s19, 3
      %p171 = por %p169, %p170
      %p172 = scmp.ne.s32.totalorder %s161, %s162
      %p173 = scmp.eq.s32.totalorder %s19, 0
      %p174 = por %p172, %p173
      %p175 = scmp.ne.s32.totalorder %s161, %s162
      %p176 = scmp.eq.s32.totalorder %s20, 3
      %p177 = por %p175, %p176
      %p179 = scmp.ne.s32.totalorder %s162, %s178
      %p180 = scmp.eq.s32.totalorder %s20, 0
      %p181 = por %p179, %p180
      %p182 = scmp.le.s32.totalorder 1, %s14
      %p183 = scmp.lt.s32.totalorder %s14, 5
      %p184 = pnand %p182, %p183
      %p185 = pneg %p184
      // Predicated region
      $region9: #{tpu_custom_call.1} parent=5 // pred_check
        _
      $region10: #{tpu_custom_call.1} parent=5 // pred_check_branch
        %187 = sbr.rel (%p184) target = $region12
      $region11: #{tpu_custom_call.1} parent=5 // pred_region
        %s188 = ssub.s32 %s14, 1
        // Predicated region
        $region13: #{tpu_custom_call.1} parent=11 // pred_check
          %p189 = pneg %p52
        $region14: #{tpu_custom_call.1} parent=11 // pred_check_branch
          %191 = sbr.rel (%p189) target = $region16
        $region15: #{tpu_custom_call.1} parent=11 // pred_region
          %s192 = smul.u32 2, %s24
          %p193 = scmp.lt.s32.totalorder %s192, 1
          %s194 = scalar_select %p193, %s192, 1
          %s195 = smul.addr %s194, 8
          %s196 = scalar_lea.vmem %s0, %s195
          %s197 = smul.u32 2, %s24
        $region16: #{tpu_custom_call.1} parent=11 // pred_fallthru
          _
        // Predicated region
        $region17: #{tpu_custom_call.1} parent=11 // pred_check
          %p198 = pneg %p73
        $region18: #{tpu_custom_call.1} parent=11 // pred_check_branch
          %200 = sbr.rel (%p198) target = $region20
        $region19: #{tpu_custom_call.1} parent=11 // pred_region
          _
        $region20: #{tpu_custom_call.1} parent=11 // pred_fallthru
          _
        // Predicated region
        $region21: #{tpu_custom_call.1} parent=11 // pred_check
          %p201 = pneg %p94
        $region22: #{tpu_custom_call.1} parent=11 // pred_check_branch
          %203 = sbr.rel (%p201) target = $region24
        $region23: #{tpu_custom_call.1} parent=11 // pred_region
          _
        $region24: #{tpu_custom_call.1} parent=11 // pred_fallthru
          _
      $region12: #{tpu_custom_call.1} parent=5 // pred_fallthru
        _
      %p204 = scmp.lt.s32.totalorder %s14, 4
      // Predicated region
      $region25: #{tpu_custom_call.1} parent=5 // pred_check
        %p205 = pneg %p204
      $region26: #{tpu_custom_call.1} parent=5 // pred_check_branch
        %207 = sbr.rel (%p205) target = $region28
      $region27: #{tpu_custom_call.1} parent=5 // pred_region
        // Predicated region
        $region29: #{tpu_custom_call.1} parent=27 // pred_check
          %p208 = pneg %p114
        $region30: #{tpu_custom_call.1} parent=27 // pred_check_branch
          %210 = sbr.rel (%p208) target = $region32
        $region31: #{tpu_custom_call.1} parent=27 // pred_region
          %p211 = scmp.lt.s32.totalorder %s21, 3
          %s212 = scalar_select %p211, %s21, 3
          %s213 = smul.addr %s212, 8
          %s214 = scalar_lea.vmem %s3, %s213
        $region32: #{tpu_custom_call.1} parent=27 // pred_fallthru
          _
        // Predicated region
        $region33: #{tpu_custom_call.1} parent=27 // pred_check
          %p215 = pneg %p140
        $region34: #{tpu_custom_call.1} parent=27 // pred_check_branch
          %217 = sbr.rel (%p215) target = $region36
        $region35: #{tpu_custom_call.1} parent=27 // pred_region
          %p218 = scmp.lt.s32.totalorder %s21, 3
          %s219 = scalar_select %p218, %s21, 3
          %s220 = scalar_lea.vmem %s4, %s219
        $region36: #{tpu_custom_call.1} parent=27 // pred_fallthru
          _
      $region28: #{tpu_custom_call.1} parent=5 // pred_fallthru
        _
      %p221 = scmp.le.s32.totalorder 1, %s14
      %p222 = scmp.lt.s32.totalorder %s14, 5
      %p223 = pnand %p221, %p222
      %p224 = pneg %p223
      // Predicated region
      $region37: #{tpu_custom_call.1} parent=5 // pred_check
        _
      $region38: #{tpu_custom_call.1} parent=5 // pred_check_branch
        %226 = sbr.rel (%p223) target = $region40
      $region39: #{tpu_custom_call.1} parent=5 // pred_region
        %s227 = ssub.s32 %s14, 1
        %s228 = smul.u32 2, %s24
        %p229 = scmp.lt.s32.totalorder %s228, 1
        %s230 = scalar_select %p229, %s228, 1
        %s231 = smul.addr %s230, 8
        %s232 = scalar_lea.vmem %s0, %s231
        %p233 = pneg %p52
        %p234 = pneg %p49
        %p235 = pneg %p73
        %p236 = pneg %p70
        %p237 = pneg %p94
        %p238 = pneg %p91
        %p239 = scmp.lt.s32.totalorder %s23, 3
        %s240 = scalar_select %p239, %s23, 3
        %s241 = smul.addr %s240, 8
        %s242 = scalar_lea.vmem %s3, %s241
        %p243 = pneg %p120
        %p244 = pneg %p117
        %p245 = scmp.lt.s32.totalorder %s23, 3
        %s246 = scalar_select %p245, %s23, 3
        %s247 = scalar_lea.vmem %s4, %s246
        %p248 = pneg %p146
        %p249 = pneg %p143
        %p250 = pneg %p174
        %p251 = pneg %p171
        %s252 = sand.u32 %s161, 1
        %s253 = scalar_lea.sflag [#allocation3], %s252
        %s254 = sand.u32 %s161, 1
        %s255 = smul.addr %s254, 16
        %s256 = scalar_lea.vmem [#allocation2], %s255
        %s257 = smul.u32 2, %s24
        %p258 = scmp.lt.s32.totalorder %s257, 1
        %s259 = scalar_select %p258, %s257, 1
        %s260 = smul.addr %s259, 8
        %s261 = scalar_lea.vmem %s0, %s260
        %s262 = smul.u32 2, %s24
        %p263 = scmp.lt.s32.totalorder %s23, 3
        %s264 = scalar_select %p263, %s23, 3
        %s265 = smul.addr %s264, 8
        %s266 = scalar_lea.vmem %s3, %s265
        %p267 = scmp.lt.s32.totalorder %s23, 3
        %s268 = scalar_select %p267, %s23, 3
        %s269 = scalar_lea.vmem %s4, %s268
        %s270 = smul.u32 2, %s24
        %v271 = vld [vmem:[%s261] sm:$0xff]
        %v272 = vld [vmem:[%s261 + $0x8] sm:$0xff]
        %v273 = vld [vmem:[%s1] sm:$0x1]
        %v275 = vlaneseq
        %v276 = vshrl.u32 %v275, 7
        %v277 = vsub.s32 0, %v276
        %v278 = vrot.slane %v273, %v277
        %v280 = vmul.f32 %v271, %v278
        %v281 = vmul.f32 %v272, %v278
        %v282 = vld [vmem:[%s2] sm:$0x1]
        %v284 = vlaneseq
        %v285 = vshrl.u32 %v284, 7
        %v286 = vsub.s32 0, %v285
        %v287 = vrot.slane %v282, %v286
        %v289 = vadd.f32 %v280, %v287
        %v290 = vadd.f32 %v281, %v287
        %vm291 = vcmp.gt.f32.partialorder %v289, 0.0
        %vm292 = vcmp.gt.f32.partialorder %v290, 0.0
        %v293 = vmin.f32 %v289, 0.0
        %v294 = vmin.f32 %v290, 0.0
        %v295 = vmul.f32 %v293, 1.442695
        %v296 = vpow.pop %v295
        %v297 = vmul.f32 %v294, 1.442695
        %v298 = vpow.pop %v297
        %v299 = vsub.f32 %v296, 1.0
        %v300 = vsub.f32 %v298, 1.0
        %v301 = vsel %vm291, %v289, %v299
        %v302 = vsel %vm292, %v290, %v300
        %v303 = vld [vmem:[%s266] sm:$0xff]
        %v304 = vld [vmem:[%s269] sm:$0x1]
        %v306 = vlaneseq
        %v307 = vshrl.u32 %v306, 7
        %v308 = vsub.s32 0, %v307
        %v309 = vrot.slane %v304, %v308
        %vm311 = vcmask 64512
        %v313 = vsel %vm311, %v301, 0
        %v316 = vsel %vm311, %v302, 0
        %318 = vmatprep.subr.mxu0 0.0
        %319 = vmatpush1.msra.mxu0 %v303
        %320 = vmatprep.subr.mxu0 0.0
        %321 = vmatpush1.msra.mxu0 0.0
        %322 = vmatprep.subr.mxu0 0.0
        %323 = vmatpush1.msra.mxu0 0.0
        %324 = vmatprep.subr.mxu0 0.0
        %325 = vmatpush1.msra.mxu0 0.0
        %326 = vmatprep.subr.mxu0 0.0
        %327 = vmatpush1.msra.mxu0 0.0
        %328 = vmatprep.subr.mxu0 0.0
        %329 = vmatpush1.msra.mxu0 0.0
        %330 = vmatprep.subr.mxu0 0.0
        %331 = vmatpush1.msra.mxu0 0.0
        %332 = vmatprep.subr.mxu0 0.0
        %333 = vmatpush1.msra.mxu0 0.0
        %334 = vmatprep.subr.mxu0 0.0
        %335 = vmatpush1.msra.mxu0 0.0
        %336 = vmatprep.subr.mxu0 0.0
        %337 = vmatpush1.msra.mxu0 0.0
        %338 = vmatprep.subr.mxu0 0.0
        %339 = vmatpush1.msra.mxu0 0.0
        %340 = vmatprep.subr.mxu0 0.0
        %341 = vmatpush1.msra.mxu0 0.0
        %342 = vmatprep.subr.mxu0 0.0
        %343 = vmatpush1.msra.mxu0 0.0
        %344 = vmatprep.subr.mxu0 0.0
        %345 = vmatpush1.msra.mxu0 0.0
        %346 = vmatprep.subr.mxu0 0.0
        %347 = vmatpush1.msra.mxu0 0.0
        %348 = vmatprep.subr.mxu0 0.0
        %349 = vmatpush1.msra.mxu0 0.0
        %350 = vmatprep.subr.mxu0 0.0
        %351 = vmatpush1.msra.mxu0 0.0
        %352 = vmatprep.subr.mxu0 0.0
        %353 = vmatpush1.msra.mxu0 0.0
        %354 = vmatprep.subr.mxu0 0.0
        %355 = vmatpush1.msra.mxu0 0.0
        %356 = vmatprep.subr.mxu0 0.0
        %357 = vmatpush1.msra.mxu0 0.0
        %358 = vmatprep.subr.mxu0 0.0
        %359 = vmatpush1.msra.mxu0 0.0
        %360 = vmatprep.subr.mxu0 0.0
        %361 = vmatpush1.msra.mxu0 0.0
        %362 = vmatprep.subr.mxu0 0.0
        %363 = vmatpush1.msra.mxu0 0.0
        %364 = vmatprep.subr.mxu0 0.0
        %365 = vmatpush1.msra.mxu0 0.0
        %366 = vmatprep.subr.mxu0 0.0
        %367 = vmatpush1.msra.mxu0 0.0
        %368 = vmatprep.subr.mxu0 0.0
        %369 = vmatpush1.msra.mxu0 0.0
        %370 = vmatprep.subr.mxu0 0.0
        %371 = vmatpush1.msra.mxu0 0.0
        %372 = vmatprep.subr.mxu0 0.0
        %373 = vmatpush1.msra.mxu0 0.0
        %374 = vmatprep.subr.mxu0 0.0
        %375 = vmatpush1.msra.mxu0 0.0
        %376 = vmatprep.subr.mxu0 0.0
        %377 = vmatpush1.msra.mxu0 0.0
        %378 = vmatprep.subr.mxu0 0.0
        %379 = vmatpush1.msra.mxu0 0.0
        %380 = vmatprep.subr.mxu0 0.0
        %381 = vmatpush1.msra.mxu0 0.0
        %382 = vmatprep.mubr.f32.mxu0 0.0
        %383 = vmatmul.mubr.f32.gmra.mrb[0].mxu0 %v313
        %v384 = vpop.f32.mrb[0].mxu0
        %v385 = vadd.f32 %v309, %v384
        %v386 = vpop.f32.mrb[0].mxu0
        %387 = vmatprep.mubr.f32.mxu0 0.0
        %388 = vmatmul.mubr.f32.gmra.mrb[0].mxu0 %v316
        %v389 = vpop.f32.mrb[0].mxu0
        %v390 = vadd.f32 %v309, %v389
        %v391 = vpop.f32.mrb[0].mxu0
        %392 = vdwg.mxu0
        %393 = vst [vmem:[%s256] sm:$0xff] %v385
        %394 = vst [vmem:[%s256 + $0x8] sm:$0xff] %v390
        %s395 = sand.u32 %s161, 1
        %s396 = scalar_lea.sflag [#allocation3], %s395
        %s397 = sand.u32 %s161, 1
        %s398 = smul.addr %s397, 16
        %s399 = scalar_lea.vmem [#allocation2], %s398
        // Predicated region
        $region41: #{tpu_custom_call.1} parent=39 // pred_check
          %p400 = pneg %p171
        $region42: #{tpu_custom_call.1} parent=39 // pred_check_branch
          %402 = sbr.rel (%p400) target = $region44
        $region43: #{tpu_custom_call.1} parent=39 // pred_region
          %s403 = smul.u32 2, %s24
          %s405 = ssub.s32 256, 256
          %406 = vsyncadd %s396, %s405
          %s407 = smul.addr %s23, 2
          %s408 = sadd.s32 %s403, %s407
          %s409 = smul.addr %s408, 128
          %s410 = scalar_lea.hbm %s5, %s409
          %s411 = sshll.u32 %s399, 4
          %s412 = int_to_ptr.vmem [resolvable:$true] %s411
          %417 = dma.vmem_to_hbm [thread:$0]  %s412, 256, %s410, %s396, 128, 128, 8
        $region44: #{tpu_custom_call.1} parent=39 // pred_fallthru
          _
      $region40: #{tpu_custom_call.1} parent=5 // pred_fallthru
        _
      %p418 = scmp.le.s32.totalorder 2, %s14
      // Predicated region
      $region45: #{tpu_custom_call.1} parent=5 // pred_check
        %p419 = pneg %p418
      $region46: #{tpu_custom_call.1} parent=5 // pred_check_branch
        %421 = sbr.rel (%p419) target = $region48
      $region47: #{tpu_custom_call.1} parent=5 // pred_region
        %s422 = ssub.s32 %s14, 2
        // Predicated region
        $region49: #{tpu_custom_call.1} parent=47 // pred_check
          %p423 = pneg %p177
        $region50: #{tpu_custom_call.1} parent=47 // pred_check_branch
          %425 = sbr.rel (%p423) target = $region52
        $region51: #{tpu_custom_call.1} parent=47 // pred_region
          %s426 = sand.u32 %s162, 1
          %s427 = scalar_lea.sflag [#allocation3], %s426
          %s428 = sand.u32 %s162, 1
          %s429 = smul.addr %s428, 16
          %s430 = scalar_lea.vmem [#allocation2], %s429
          %431 = dma.done %s427, 256
        $region52: #{tpu_custom_call.1} parent=47 // pred_fallthru
          _
      $region48: #{tpu_custom_call.1} parent=5 // pred_fallthru
        _
    $region6: #{tpu_custom_call.1} parent=1 // loop_footer
      %s18 = sadd.s32 1, %s14
    $region7: #{tpu_custom_call.1} parent=1 // loop_footer_branch
      %13 = sbr.rel target = $region3
    $region8: #{tpu_custom_call.1} parent=1 // loop_exit
      _
    %432 = vsyncpa [#allocation3], 1
    %s433 = scalar_lea.sflag [#allocation3], 1
    %434 = vsyncpa %s433, 1

</llo_original>
